<compile_context>
chip_gen: v6e
topology: v6e:2x2x1
jax: 0.10.0
libtpu: 0.0.40
codegen_flags: <defaults>
</compile_context>

<pallas_src>
import functools

import jax
import jax.numpy as jnp
from jax import lax
from jax.experimental import pallas as pl
from jax.experimental.pallas import tpu as pltpu

_LANES = 128            # lanes per vreg
_SUB = 8                # sublanes per vreg
_MAX_BLOCK_ROWS = 4096  # 4096 x 128 x f32 = 2 MiB per input per buffer
_CHUNK_ROWS = 512       # in-kernel reduction chunk (multiple of 8)


def _round_up(v: int, m: int) -> int:
    return ((v + m - 1) // m) * m


def _dice_bce_kernel(x_ref, t_ref, out_ref, *, n_elems, block_rows, chunk_rows,
                     has_pad):
    i = pl.program_id(0)
    n_chunks = block_rows // chunk_rows

    def _psum(v):
        # Collapse (chunk_rows, 128) -> (8, 128): tile-aligned reshape, pure
        # elementwise VALU adds across vregs (no cross-lane work).
        return jnp.sum(v.reshape(chunk_rows // _SUB, _SUB, _LANES), axis=0)

    def _run(masked):
        if masked:
            # Flat element index within one chunk; only traced in the masked
            # (last-block) branch so steady-state blocks pay nothing for it.
            r = lax.broadcasted_iota(jnp.int32, (chunk_rows, _LANES), 0)
            c = lax.broadcasted_iota(jnp.int32, (chunk_rows, _LANES), 1)
            chunk_idx = r * _LANES + c
            block_base = i * (block_rows * _LANES)

        acc = [jnp.zeros((_SUB, _LANES), jnp.float32) for _ in range(4)]
        for k in range(n_chunks):          # static, unrolled chunk loop
            row0 = k * chunk_rows
            x = x_ref[row0:row0 + chunk_rows, :].astype(jnp.float32)
            t = t_ref[row0:row0 + chunk_rows, :].astype(jnp.float32)

            # One transcendental exp per element, reused by BCE and sigmoid.
            e = jnp.exp(-jnp.abs(x))                    # EUP
            denom = 1.0 + e
            p = jnp.where(x >= 0.0, 1.0, e) / denom     # sigmoid(x), stable
            # Numerically stable BCE-with-logits (== torch BCEWithLogitsLoss):
            #   max(x, 0) - x*t + log(1 + exp(-|x|))
            bce = jnp.maximum(x, 0.0) - x * t + jnp.log1p(e)

            if masked:
                # Select (never multiply): the OOB / padded tail of the last
                # block holds stale VMEM data (possibly NaN through exp) that
                # must not leak into the sums.
                valid = chunk_idx < (n_elems - block_base - row0 * _LANES)
                zero = jnp.zeros_like(x)
                bce = jnp.where(valid, bce, zero)
                p = jnp.where(valid, p, zero)
                t = jnp.where(valid, t, zero)

            for q, v in enumerate((bce, t * p, t, p)):
                acc[q] = acc[q] + _psum(v)

        for q in range(4):
            out_ref[0, q] = acc[q]

    if has_pad:
        last = pl.num_programs(0) - 1

        @pl.when(i != last)      # steady-state blocks: no mask cost
        def _():
            _run(masked=False)

        @pl.when(i == last)      # only the last block pays the tail mask
        def _():
            _run(masked=True)
    else:
        _run(masked=False)


@functools.partial(jax.jit, static_argnames=("weight_bce", "weight_dice"))
def dice_bce_loss(inp, target, weight_bce=0.5, weight_dice=0.5):
    """Pallas equivalent of DiceBCELoss.forward(input, target) -> scalar f32."""
    assert inp.shape == target.shape
    n = int(inp.size)

    x = inp.reshape(-1)
    t = target.reshape(-1)

    rows = pl.cdiv(n, _LANES)
    if rows > _CHUNK_ROWS:
        # Streaming case: fixed-size blocks; the last block may run past the
        # end of the array (undefined tail) and is masked in-kernel -- no
        # wrapper-side block-alignment pad, hence no full HBM copy.
        chunk_rows = _CHUNK_ROWS
        block_rows = min(_MAX_BLOCK_ROWS, _round_up(rows, _CHUNK_ROWS))
        rows_padded = rows
    else:
        # Tiny input: one exactly-fitting block (pad cost is negligible here).
        chunk_rows = block_rows = _round_up(rows, _SUB)
        rows_padded = block_rows

    # Pad at most to the next multiple of 128 lanes (needed for the (-1, 128)
    # reshape); for lane-aligned inputs this is a no-op.
    pad = rows_padded * _LANES - n
    if pad:
        x = jnp.pad(x, (0, pad))
        t = jnp.pad(t, (0, pad))
    x2 = x.reshape(rows_padded, _LANES)
    t2 = t.reshape(rows_padded, _LANES)

    n_blocks = pl.cdiv(rows_padded, block_rows)
    has_pad = n_blocks * block_rows * _LANES != n

    kernel = functools.partial(
        _dice_bce_kernel, n_elems=n, block_rows=block_rows,
        chunk_rows=chunk_rows, has_pad=has_pad)

    in_spec = pl.BlockSpec((block_rows, _LANES), lambda i: (i, 0))
    # One small lane-dense partial-sum block per grid step; the grid axis is
    # fully "parallel" (no carried state) so it can be split across both
    # TensorCores on v7x.  Partials are combined below (tiny XLA reduce).
    partials = pl.pallas_call(
        kernel,
        out_shape=jax.ShapeDtypeStruct((n_blocks, 4, _SUB, _LANES), jnp.float32),
        grid_spec=pltpu.PrefetchScalarGridSpec(
            num_scalar_prefetch=0,
            grid=(n_blocks,),
            in_specs=[in_spec, in_spec],
            out_specs=pl.BlockSpec((1, 4, _SUB, _LANES),
                                   lambda i: (i, 0, 0, 0)),
        ),
        compiler_params=pltpu.CompilerParams(
            dimension_semantics=("parallel",),
            vmem_limit_bytes=32 << 20),
    )(x2, t2)

    sums = jnp.sum(partials, axis=(0, 2, 3))   # [bce_sum, inter, sum_t, sum_p]
    bce_mean = sums[0] / n
    dice_loss_val = 1.0 - 2.0 * sums[1] / (sums[2] + sums[3] + 1e-6)
    return weight_bce * bce_mean + weight_dice * dice_loss_val


def _reference_loss(x, t, weight_bce=0.5, weight_dice=0.5):
    x = x.astype(jnp.float32)
    t = t.astype(jnp.float32)
    bce = jnp.mean(jnp.maximum(x, 0.0) - x * t + jnp.log1p(jnp.exp(-jnp.abs(x))))
    p = jax.nn.sigmoid(x)
    inter = jnp.sum(t * p)
    union = jnp.sum(t) + jnp.sum(p) + 1e-6
    dice = 1.0 - 2.0 * inter / union
    return weight_bce * bce + weight_dice * dice


if __name__ == "__main__":
    key = jax.random.PRNGKey(0)
    k1, k2, k3, k4 = jax.random.split(key, 4)

    # NCHW logits and binary targets, lane-aligned small shape.
    x = jax.random.normal(k1, (2, 4, 16, 16), dtype=jnp.float32)
    t = (jax.random.uniform(k2, (2, 4, 16, 16)) > 0.5).astype(jnp.float32)
    loss = jax.block_until_ready(dice_bce_loss(x, t))
    ref = _reference_loss(x, t)
    assert jnp.allclose(loss, ref, atol=1e-5, rtol=1e-5), (loss, ref)

    # Ragged size (n not a multiple of 128) exercising the masked-tail path.
    x2 = jax.random.normal(k3, (2, 3, 7, 11), dtype=jnp.float32)
    t2 = (jax.random.uniform(k4, (2, 3, 7, 11)) > 0.5).astype(jnp.float32)
    loss2 = jax.block_until_ready(dice_bce_loss(x2, t2))
    ref2 = _reference_loss(x2, t2)
    assert jnp.allclose(loss2, ref2, atol=1e-5, rtol=1e-5), (loss2, ref2)

    print("KERNEL_OK")
</pallas_src>

<mosaic_0001>
module attributes {stable_mosaic.version = 11 : i64} {
  func.func @_dice_bce_kernel(%arg0: i32, %arg1: memref<16x128xf32, #tpu.memory_space<vmem>>, %arg2: memref<16x128xf32, #tpu.memory_space<vmem>>, %arg3: memref<1x4x8x128xf32, #tpu.memory_space<vmem>>) attributes {dimension_semantics = [#tpu.dimension_semantics<parallel>], iteration_bounds = array<i64: 1>, scalar_prefetch = 0 : i64, scratch_operands = 0 : i64, tpu.core_type = #tpu.core_type<tc>, window_params = [{transform_indices = @transform_0, window_bounds = array<i64: 16, 128>}, {transform_indices = @transform_1, window_bounds = array<i64: 16, 128>}, {transform_indices = @transform_2, window_bounds = array<i64: 1, 4, 8, 128>}]} {
    %cst = arith.constant 0.000000e+00 : f32
    %0 = vector.broadcast %cst : f32 to vector<8x128xf32>
    %cst_0 = arith.constant 0.000000e+00 : f32
    %1 = vector.broadcast %cst_0 : f32 to vector<8x128xf32>
    %cst_1 = arith.constant 0.000000e+00 : f32
    %2 = vector.broadcast %cst_1 : f32 to vector<8x128xf32>
    %cst_2 = arith.constant 0.000000e+00 : f32
    %3 = vector.broadcast %cst_2 : f32 to vector<8x128xf32>
    %c0 = arith.constant 0 : index
    %c0_3 = arith.constant 0 : index
    %4 = vector.load %arg1[%c0, %c0_3] : memref<16x128xf32, #tpu.memory_space<vmem>>, vector<16x128xf32>
    %c0_4 = arith.constant 0 : index
    %c0_5 = arith.constant 0 : index
    %5 = vector.load %arg2[%c0_4, %c0_5] : memref<16x128xf32, #tpu.memory_space<vmem>>, vector<16x128xf32>
    %6 = math.absf %4 : vector<16x128xf32>
    %cst_6 = arith.constant 0.000000e+00 : f32
    %7 = vector.broadcast %cst_6 : f32 to vector<16x128xf32>
    %8 = arith.subf %7, %6 : vector<16x128xf32>
    %9 = math.exp %8 : vector<16x128xf32>
    %cst_7 = arith.constant 1.000000e+00 : f32
    %10 = vector.broadcast %cst_7 : f32 to vector<16x128xf32>
    %11 = arith.addf %10, %9 : vector<16x128xf32>
    %cst_8 = arith.constant 0.000000e+00 : f32
    %12 = vector.broadcast %cst_8 : f32 to vector<16x128xf32>
    %13 = arith.cmpf oge, %4, %12 : vector<16x128xf32>
    %cst_9 = arith.constant 1.000000e+00 : f32
    %14 = vector.broadcast %cst_9 : f32 to vector<16x128xf32>
    %15 = arith.select %13, %14, %9 : vector<16x128xi1>, vector<16x128xf32>
    %16 = arith.divf %15, %11 : vector<16x128xf32>
    %cst_10 = arith.constant 0.000000e+00 : f32
    %17 = vector.broadcast %cst_10 : f32 to vector<16x128xf32>
    %18 = arith.maximumf %4, %17 : vector<16x128xf32>
    %19 = arith.mulf %4, %5 : vector<16x128xf32>
    %20 = arith.subf %18, %19 : vector<16x128xf32>
    %21 = math.log1p %9 : vector<16x128xf32>
    %22 = arith.addf %20, %21 : vector<16x128xf32>
    %23 = arith.mulf %5, %16 : vector<16x128xf32>
    %24 = vector.shape_cast %22 : vector<16x128xf32> to vector<2x8x128xf32>
    %cst_11 = arith.constant dense<0.000000e+00> : vector<8x128xf32>
    %25 = vector.multi_reduction <add>, %24, %cst_11 [0] : vector<2x8x128xf32> to vector<8x128xf32>
    %26 = arith.addf %0, %25 : vector<8x128xf32>
    %27 = vector.shape_cast %23 : vector<16x128xf32> to vector<2x8x128xf32>
    %cst_12 = arith.constant dense<0.000000e+00> : vector<8x128xf32>
    %28 = vector.multi_reduction <add>, %27, %cst_12 [0] : vector<2x8x128xf32> to vector<8x128xf32>
    %29 = arith.addf %1, %28 : vector<8x128xf32>
    %30 = vector.shape_cast %5 : vector<16x128xf32> to vector<2x8x128xf32>
    %cst_13 = arith.constant dense<0.000000e+00> : vector<8x128xf32>
    %31 = vector.multi_reduction <add>, %30, %cst_13 [0] : vector<2x8x128xf32> to vector<8x128xf32>
    %32 = arith.addf %2, %31 : vector<8x128xf32>
    %33 = vector.shape_cast %16 : vector<16x128xf32> to vector<2x8x128xf32>
    %cst_14 = arith.constant dense<0.000000e+00> : vector<8x128xf32>
    %34 = vector.multi_reduction <add>, %33, %cst_14 [0] : vector<2x8x128xf32> to vector<8x128xf32>
    %35 = arith.addf %3, %34 : vector<8x128xf32>
    %c0_15 = arith.constant 0 : index
    %c0_16 = arith.constant 0 : index
    %c0_17 = arith.constant 0 : index
    %c0_18 = arith.constant 0 : index
    %36 = vector.load %arg3[%c0_15, %c0_16, %c0_17, %c0_18] : memref<1x4x8x128xf32, #tpu.memory_space<vmem>>, vector<1x1x8x128xf32>
    %37 = vector.shape_cast %36 : vector<1x1x8x128xf32> to vector<8x128xf32>
    %38 = vector.shape_cast %26 : vector<8x128xf32> to vector<1x1x8x128xf32>
    tpu.vector_store %arg3[%c0_15, %c0_16, %c0_17, %c0_18], %38 {strides = array<i32>} : memref<1x4x8x128xf32, #tpu.memory_space<vmem>>, vector<1x1x8x128xf32>,
    %c0_19 = arith.constant 0 : index
    %c1 = arith.constant 1 : index
    %c0_20 = arith.constant 0 : index
    %c0_21 = arith.constant 0 : index
    %39 = vector.load %arg3[%c0_19, %c1, %c0_20, %c0_21] : memref<1x4x8x128xf32, #tpu.memory_space<vmem>>, vector<1x1x8x128xf32>
    %40 = vector.shape_cast %39 : vector<1x1x8x128xf32> to vector<8x128xf32>
    %41 = vector.shape_cast %29 : vector<8x128xf32> to vector<1x1x8x128xf32>
    tpu.vector_store %arg3[%c0_19, %c1, %c0_20, %c0_21], %41 {strides = array<i32>} : memref<1x4x8x128xf32, #tpu.memory_space<vmem>>, vector<1x1x8x128xf32>,
    %c0_22 = arith.constant 0 : index
    %c2 = arith.constant 2 : index
    %c0_23 = arith.constant 0 : index
    %c0_24 = arith.constant 0 : index
    %42 = vector.load %arg3[%c0_22, %c2, %c0_23, %c0_24] : memref<1x4x8x128xf32, #tpu.memory_space<vmem>>, vector<1x1x8x128xf32>
    %43 = vector.shape_cast %42 : vector<1x1x8x128xf32> to vector<8x128xf32>
    %44 = vector.shape_cast %32 : vector<8x128xf32> to vector<1x1x8x128xf32>
    tpu.vector_store %arg3[%c0_22, %c2, %c0_23, %c0_24], %44 {strides = array<i32>} : memref<1x4x8x128xf32, #tpu.memory_space<vmem>>, vector<1x1x8x128xf32>,
    %c0_25 = arith.constant 0 : index
    %c3 = arith.constant 3 : index
    %c0_26 = arith.constant 0 : index
    %c0_27 = arith.constant 0 : index
    %45 = vector.load %arg3[%c0_25, %c3, %c0_26, %c0_27] : memref<1x4x8x128xf32, #tpu.memory_space<vmem>>, vector<1x1x8x128xf32>
    %46 = vector.shape_cast %45 : vector<1x1x8x128xf32> to vector<8x128xf32>
    %47 = vector.shape_cast %35 : vector<8x128xf32> to vector<1x1x8x128xf32>
    tpu.vector_store %arg3[%c0_25, %c3, %c0_26, %c0_27], %47 {strides = array<i32>} : memref<1x4x8x128xf32, #tpu.memory_space<vmem>>, vector<1x1x8x128xf32>,
    return
  }
  func.func @transform_0(%arg0: i32) -> (i32, i32) {
    %c0_i32 = arith.constant 0 : i32
    %c0_i32_0 = arith.constant 0 : i32
    return %arg0, %c0_i32 : i32, i32
  }
  func.func @transform_1(%arg0: i32) -> (i32, i32) {
    %c0_i32 = arith.constant 0 : i32
    %c0_i32_0 = arith.constant 0 : i32
    return %arg0, %c0_i32 : i32, i32
  }
  func.func @transform_2(%arg0: i32) -> (i32, i32, i32, i32) {
    %c0_i32 = arith.constant 0 : i32
    %c0_i32_0 = arith.constant 0 : i32
    %c0_i32_1 = arith.constant 0 : i32
    %c0_i32_2 = arith.constant 0 : i32
    return %arg0, %c0_i32, %c0_i32_0, %c0_i32_1 : i32, i32, i32, i32
  }
}

</mosaic_0001>

<llo_original>
// kernel: dice_bce_loss.1
$region0: #{dice_bce_loss.1}
  #allocation0 [shape = 'u32[]', space=smem, size = 0x4, offset = 0x4, fixed_abs, tag = 'smem constant byte address 0x4 - core index']
  #allocation1 [shape = 'u32[144,128]{1,0:T(1,128)}', space=vmem, size = 0x12000, scoped, tag = 'internal scratch']
  %s0 = inlined_call_operand.vmem [shape: f32[16,128], index: 0, kind: input, shape index: {}]
  %s1 = inlined_call_operand.vmem [shape: f32[16,128], index: 1, kind: input, shape index: {}]
  %s2 = inlined_call_operand.vmem [shape: f32[1,4,8,128], index: 2, kind: output, shape index: {}]
  %s3 = sld [smem:[#allocation0]]
  $region18: #{dice_bce_loss.1} parent=0
    _
  %s5 = ssub.s32 1, %s3
  %s6 = scalar_select 0, %s5, %s3
  // Predicated region
  $region2: #{dice_bce_loss.1} parent=0 // pred_check
    _
  $region3: #{dice_bce_loss.1} parent=0 // pred_check_branch
    %8 = sbr.rel (0) target = $region5
  $region4: #{dice_bce_loss.1} parent=0 // pred_region
    _
  $region5: #{dice_bce_loss.1} parent=0 // pred_fallthru
    _
  // Predicated region
  $region6: #{dice_bce_loss.1} parent=0 // pred_check
    _
  $region7: #{dice_bce_loss.1} parent=0 // pred_check_branch
    %10 = sbr.rel (0) target = $region9
  $region8: #{dice_bce_loss.1} parent=0 // pred_region
    _
  $region9: #{dice_bce_loss.1} parent=0 // pred_fallthru
    _
  %v11 = vld [vmem:[%s0] sm:$0xff]
  %v12 = vld [vmem:[%s0 + $0x8] sm:$0xff]
  %v13 = vld [vmem:[%s1] sm:$0xff]
  %v14 = vld [vmem:[%s1 + $0x8] sm:$0xff]
  %v15 = vand.u32 2147483647, %v11
  %v16 = vand.u32 2147483647, %v12
  %v17 = vsub.f32 0.0, %v15
  %v18 = vsub.f32 0.0, %v16
  %v19 = vmul.f32 %v17, 1.442695
  %v20 = vpow.pop %v19
  %v21 = vmul.f32 %v18, 1.442695
  %v22 = vpow.pop %v21
  %v23 = vadd.f32 %v20, 1.0
  %v24 = vadd.f32 %v22, 1.0
  %vm25 = vcmp.ge.f32.partialorder %v11, 0.0
  %vm26 = vcmp.ge.f32.partialorder %v12, 0.0
  %v27 = vsel %vm25, 1.0, %v20
  %v28 = vsel %vm26, 1.0, %v22
  %v29 = vrcp.pop %v23
  %v30 = vmul.f32 %v27, %v29
  %v31 = vrcp.pop %v24
  %v32 = vmul.f32 %v28, %v31
  %v33 = vmax.f32 %v11, 0.0
  %v34 = vmax.f32 %v12, 0.0
  %v35 = vmul.f32 %v11, %v13
  %v36 = vmul.f32 %v12, %v14
  %v37 = vsub.f32 %v33, %v35
  %v38 = vsub.f32 %v34, %v36
  %v39 = vadd.f32 %v20, 1.0
  %v40 = vlog2.pop %v39
  %v41 = vmul.f32 %v40, 0.6931472
  %v42 = vmul.f32 -0.5, %v20
  %v43 = vadd.f32 %v42, 1.0
  %v44 = vmul.f32 %v43, %v20
  %v45 = vand.u32 2147483647, %v20
  %vm46 = vcmp.lt.f32.partialorder %v45, 0.0004427343
  %v47 = vsel %vm46, %v44, %v41
  %v48 = vadd.f32 %v22, 1.0
  %v49 = vlog2.pop %v48
  %v50 = vmul.f32 %v49, 0.6931472
  %v51 = vmul.f32 -0.5, %v22
  %v52 = vadd.f32 %v51, 1.0
  %v53 = vmul.f32 %v52, %v22
  %v54 = vand.u32 2147483647, %v22
  %vm55 = vcmp.lt.f32.partialorder %v54, 0.0004427343
  %v56 = vsel %vm55, %v53, %v50
  %v57 = vadd.f32 %v37, %v47
  %v58 = vadd.f32 %v38, %v56
  %v59 = vmul.f32 %v13, %v30
  %v60 = vmul.f32 %v14, %v32
  %v61 = vadd.f32 %v57, %v58
  %v62 = vadd.f32 %v61, 0.0
  %v63 = vadd.f32 %v59, %v60
  %v64 = vadd.f32 %v63, 0.0
  %v65 = vadd.f32 %v13, %v14
  %v66 = vadd.f32 %v65, 0.0
  %v67 = vadd.f32 %v30, %v32
  %v68 = vadd.f32 %v67, 0.0
  %69 = vst [vmem:[%s2] sm:$0xff] %v62
  %s70 = scalar_lea.vmem %s2, 8
  %71 = vst [vmem:[%s70] sm:$0xff] %v64
  %s72 = scalar_lea.vmem %s2, 16
  %73 = vst [vmem:[%s72] sm:$0xff] %v66
  %s74 = scalar_lea.vmem %s2, 24
  %75 = vst [vmem:[%s74] sm:$0xff] %v68
  // Predicated region
  $region10: #{dice_bce_loss.1} parent=0 // pred_check
    _
  $region11: #{dice_bce_loss.1} parent=0 // pred_check_branch
    %77 = sbr.rel (0) target = $region13
  $region12: #{dice_bce_loss.1} parent=0 // pred_region
    _
  $region13: #{dice_bce_loss.1} parent=0 // pred_fallthru
    _
  // Predicated region
  $region14: #{dice_bce_loss.1} parent=0 // pred_check
    _
  $region15: #{dice_bce_loss.1} parent=0 // pred_check_branch
    %79 = sbr.rel (0) target = $region17
  $region16: #{dice_bce_loss.1} parent=0 // pred_region
    _
  $region17: #{dice_bce_loss.1} parent=0 // pred_fallthru
    _

</llo_original>
